<compile_context>
chip_gen: v7x
topology: tpu7x:2x2x1
jax: 0.10.0
libtpu: 0.0.40
codegen_flags: <defaults>
</compile_context>

<pallas_src>
import functools

import jax
import jax.numpy as jnp
from jax.experimental import pallas as pl
from jax.experimental.pallas import tpu as pltpu


def _tvar_kernel(cols_ref, w_ref, isz_ref, b_ref, o_ref, *, inv_kk, do_sqrt):
    """One (batch n, output-cell o) tile.

    cols_ref: (C, KK, L)  pre-unfolded input, lane dim = L = Hout*Wout
    w_ref:    (C, KK, 1)  weights of output cell o
    isz_ref:  (C, 1, 1)   exact 1 / sum_k W  (hoisted reciprocal)
    b_ref:    (C, 1, 1)   bias of output cell o
    o_ref:    (C, KK, L)  output tile (single contiguous lane-dense store)
    """
    cols = cols_ref[...]                                   # (C, KK, L)
    w = w_ref[...]                                         # (C, KK, 1)
    inv_size = isz_ref[...]                                # (C, 1, 1)
    bias = b_ref[...]                                      # (C, 1, 1)

    mul = cols * w                                         # (C, KK, L)
    mean = jnp.sum(mul, axis=1, keepdims=True) * inv_kk    # (C, 1, L)
    d = mul - mean
    i = d * d * inv_size + bias                            # (C, KK, L)
    if do_sqrt:
        i = jnp.sqrt(i)                                    # fused (EUP slot)
    o_ref[...] = i.astype(o_ref.dtype)


def _unfold_nchw(x, kh, kw, stride, dilation):
    """torch.nn.functional.unfold ordering -> (N, C, KK, Hout*Wout)."""
    N, C, H, W = x.shape
    hout = (H - dilation * (kh - 1) - 1) // stride + 1
    wout = (W - dilation * (kw - 1) - 1) // stride + 1
    taps = []
    for dy in range(kh):
        for dx in range(kw):
            y0 = dy * dilation
            x0 = dx * dilation
            taps.append(
                x[:, :, y0:y0 + (hout - 1) * stride + 1:stride,
                      x0:x0 + (wout - 1) * stride + 1:stride])
    cols = jnp.stack(taps, axis=2)                         # (N, C, KK, hout, wout)
    return cols.reshape(N, C, kh * kw, hout * wout), hout, wout


@functools.partial(jax.jit,
                   static_argnames=("window", "stride", "dilation", "pad", "sqrt"))
def tvar_forward(x, W, B, *, window, stride=1, dilation=1, pad=0, sqrt=0):
    """JAX/Pallas equivalent of TvarLayer.forward (NCHW, IDC=True, SCH=False)."""
    N, C = x.shape[0], x.shape[1]
    kh, kw = window
    KK = kh * kw
    O = W.shape[0]

    x = x.astype(jnp.float32)
    if pad:
        x = jnp.pad(x, ((0, 0), (0, 0), (pad, pad), (pad, pad)))

    # im2col in the wrapper: every kernel operand is lane-dense in L.
    cols, hout, wout = _unfold_nchw(x, kh, kw, stride, dilation)   # (N, C, KK, L)
    L = hout * wout

    w = W.reshape(O, C, KK, 1).astype(jnp.float32)          # torch W: (O, C, KK, 1)
    b = B.reshape(O, C, 1, 1).astype(jnp.float32)           # torch B: (O, C, 1, 1)
    size = jnp.sum(w, axis=2, keepdims=True)                # (O, C, 1, 1)
    inv_size = 1.0 / size                                   # exact, hoisted out of kernel

    kernel = functools.partial(_tvar_kernel, inv_kk=1.0 / KK, do_sqrt=bool(sqrt))

    out5 = pl.pallas_call(
        kernel,
        out_shape=jax.ShapeDtypeStruct((N, O, C, KK, L), jnp.float32),
        grid=(N, O),
        in_specs=[
            pl.BlockSpec((None, C, KK, L), lambda n, o: (n, 0, 0, 0)),
            pl.BlockSpec((None, C, KK, 1), lambda n, o: (o, 0, 0, 0)),
            pl.BlockSpec((None, C, 1, 1), lambda n, o: (o, 0, 0, 0)),
            pl.BlockSpec((None, C, 1, 1), lambda n, o: (o, 0, 0, 0)),
        ],
        out_specs=pl.BlockSpec((None, None, C, KK, L),
                               lambda n, o: (n, o, 0, 0, 0)),
        compiler_params=pltpu.CompilerParams(
            dimension_semantics=("parallel", "parallel"),
            vmem_limit_bytes=32 * 1024 * 1024),
    )(cols, w, inv_size, b)

    # Row-major (N, O, C, KK, L) -> (N, O*C*KK, L): free (layout-preserving) reshape.
    return out5.reshape(N, O * C * KK, L)


def tvar_reference(x, W, B, *, window, stride=1, dilation=1, pad=0, sqrt=0):
    """Pure-JAX reference mirroring the torch code (for validation)."""
    N, C, H, Wsp = x.shape
    kh, kw = window
    KK = kh * kw
    O = W.shape[0]
    x = x.astype(jnp.float32)
    if pad:
        x = jnp.pad(x, ((0, 0), (0, 0), (pad, pad), (pad, pad)))
        H += 2 * pad
        Wsp += 2 * pad
    hout = (H - dilation * (kh - 1) - 1) // stride + 1
    wout = (Wsp - dilation * (kw - 1) - 1) // stride + 1
    cols = jnp.stack(
        [x[:, :, dy * dilation:dy * dilation + (hout - 1) * stride + 1:stride,
              dx * dilation:dx * dilation + (wout - 1) * stride + 1:stride]
         for dy in range(kh) for dx in range(kw)], axis=2)           # (N,C,KK,hout,wout)
    cols = cols.reshape(N, C, KK, hout * wout)
    w = W.reshape(O, C, KK).astype(jnp.float32)[None, :, :, :, None]  # (1,O,C,KK,1)
    mul = cols[:, None] * w                                           # (N,O,C,KK,L)
    size = jnp.sum(w, axis=3, keepdims=True)                          # (1,O,C,1,1)
    mean = jnp.mean(mul, axis=3, keepdims=True)                       # (N,O,C,1,L)
    i = (mul - mean) ** 2 / size + B.reshape(O, C).astype(jnp.float32)[None, :, :, None, None]
    out = i.reshape(N, -1, hout * wout)
    if sqrt:
        out = jnp.sqrt(out)
    return out


if __name__ == "__main__":
    key = jax.random.PRNGKey(0)
    k1, k2, k3 = jax.random.split(key, 3)

    N, C, H, Wsp = 2, 4, 16, 16
    O = 3                       # num_c (number of "cells")
    window = (3, 3)
    KK = window[0] * window[1]

    x = jax.random.normal(k1, (N, C, H, Wsp), dtype=jnp.float32)

    # Deterministic kaiming-normal-style init (torch: kaiming_normal_).
    W = jax.random.normal(k2, (O, C, KK, 1), dtype=jnp.float32) * jnp.sqrt(2.0 / (C * KK))
    B = jax.random.normal(k3, (O, C, 1, 1), dtype=jnp.float32) * jnp.sqrt(2.0 / C)

    hout, wout = H - window[0] + 1, Wsp - window[1] + 1

    # sqrt=0 path.
    out = tvar_forward(x, W, B, window=window, stride=1, dilation=1, pad=0, sqrt=0)
    out = jax.block_until_ready(out)
    assert out.shape == (N, O * C * KK, hout * wout), out.shape
    ref = tvar_reference(x, W, B, window=window, stride=1, dilation=1, pad=0, sqrt=0)
    assert jnp.allclose(out, ref, rtol=1e-5, atol=1e-5), "mismatch vs reference (sqrt=0)"

    # Fused-sqrt + padding path (positive weights/bias keep the sqrt argument >= 0).
    Wp = jnp.abs(W) + 0.05
    Bp = jnp.abs(B)
    out_s = tvar_forward(x, Wp, Bp, window=window, stride=1, dilation=1, pad=1, sqrt=1)
    out_s = jax.block_until_ready(out_s)
    ref_s = tvar_reference(x, Wp, Bp, window=window, stride=1, dilation=1, pad=1, sqrt=1)
    assert out_s.shape == ref_s.shape, (out_s.shape, ref_s.shape)
    assert jnp.allclose(out_s, ref_s, rtol=1e-5, atol=1e-5), "mismatch vs reference (sqrt=1, pad=1)"

    print("KERNEL_OK")
</pallas_src>

<mosaic_0001>
module attributes {stable_mosaic.version = 11 : i64} {
  func.func @_tvar_kernel(%arg0: i32, %arg1: i32, %arg2: memref<1x4x9x196xf32, #tpu.memory_space<vmem>>, %arg3: memref<1x4x9x1xf32, #tpu.memory_space<vmem>>, %arg4: memref<1x4x1x1xf32, #tpu.memory_space<vmem>>, %arg5: memref<1x4x1x1xf32, #tpu.memory_space<vmem>>, %arg6: memref<1x1x4x9x196xf32, #tpu.memory_space<vmem>>) attributes {dimension_semantics = [#tpu.dimension_semantics<parallel>, #tpu.dimension_semantics<parallel>], iteration_bounds = array<i64: 2, 3>, scalar_prefetch = 0 : i64, scratch_operands = 0 : i64, tpu.core_type = #tpu.core_type<tc>, window_params = [{transform_indices = @transform_0, window_bounds = array<i64: 1, 4, 9, 196>}, {transform_indices = @transform_1, window_bounds = array<i64: 1, 4, 9, 1>}, {transform_indices = @transform_2, window_bounds = array<i64: 1, 4, 1, 1>}, {transform_indices = @transform_3, window_bounds = array<i64: 1, 4, 1, 1>}, {transform_indices = @transform_4, window_bounds = array<i64: 1, 1, 4, 9, 196>}]} {
    %c0 = arith.constant 0 : index
    %c0_0 = arith.constant 0 : index
    %c0_1 = arith.constant 0 : index
    %c0_2 = arith.constant 0 : index
    %0 = vector.load %arg2[%c0, %c0_0, %c0_1, %c0_2] : memref<1x4x9x196xf32, #tpu.memory_space<vmem>>, vector<1x4x9x196xf32>
    %1 = vector.shape_cast %0 : vector<1x4x9x196xf32> to vector<4x9x196xf32>
    %c0_3 = arith.constant 0 : index
    %c0_4 = arith.constant 0 : index
    %c0_5 = arith.constant 0 : index
    %c0_6 = arith.constant 0 : index
    %2 = vector.load %arg3[%c0_3, %c0_4, %c0_5, %c0_6] : memref<1x4x9x1xf32, #tpu.memory_space<vmem>>, vector<1x4x9x1xf32>
    %3 = vector.shape_cast %2 : vector<1x4x9x1xf32> to vector<4x9x1xf32>
    %c0_7 = arith.constant 0 : index
    %c0_8 = arith.constant 0 : index
    %c0_9 = arith.constant 0 : index
    %c0_10 = arith.constant 0 : index
    %4 = vector.load %arg4[%c0_7, %c0_8, %c0_9, %c0_10] : memref<1x4x1x1xf32, #tpu.memory_space<vmem>>, vector<1x4x1x1xf32>
    %5 = vector.shape_cast %4 : vector<1x4x1x1xf32> to vector<4x1x1xf32>
    %c0_11 = arith.constant 0 : index
    %c0_12 = arith.constant 0 : index
    %c0_13 = arith.constant 0 : index
    %c0_14 = arith.constant 0 : index
    %6 = vector.load %arg5[%c0_11, %c0_12, %c0_13, %c0_14] : memref<1x4x1x1xf32, #tpu.memory_space<vmem>>, vector<1x4x1x1xf32>
    %7 = vector.shape_cast %6 : vector<1x4x1x1xf32> to vector<4x1x1xf32>
    %8 = vector.broadcast %3 : vector<4x9x1xf32> to vector<4x9x196xf32>
    %9 = arith.mulf %1, %8 : vector<4x9x196xf32>
    %cst = arith.constant dense<0.000000e+00> : vector<4x196xf32>
    %10 = vector.multi_reduction <add>, %9, %cst [1] : vector<4x9x196xf32> to vector<4x196xf32>
    %11 = vector.shape_cast %10 : vector<4x196xf32> to vector<4x1x196xf32>
    %cst_15 = arith.constant 0.111111112 : f32
    %12 = vector.broadcast %cst_15 : f32 to vector<4x1x196xf32>
    %13 = arith.mulf %11, %12 : vector<4x1x196xf32>
    %14 = vector.broadcast %13 : vector<4x1x196xf32> to vector<4x9x196xf32>
    %15 = arith.subf %9, %14 : vector<4x9x196xf32>
    %16 = arith.mulf %15, %15 : vector<4x9x196xf32>
    %17 = vector.broadcast %5 : vector<4x1x1xf32> to vector<4x9x196xf32>
    %18 = arith.mulf %16, %17 : vector<4x9x196xf32>
    %19 = vector.broadcast %7 : vector<4x1x1xf32> to vector<4x9x196xf32>
    %20 = arith.addf %18, %19 : vector<4x9x196xf32>
    %c0_16 = arith.constant 0 : index
    %c0_17 = arith.constant 0 : index
    %c0_18 = arith.constant 0 : index
    %c0_19 = arith.constant 0 : index
    %c0_20 = arith.constant 0 : index
    %21 = vector.load %arg6[%c0_16, %c0_17, %c0_18, %c0_19, %c0_20] : memref<1x1x4x9x196xf32, #tpu.memory_space<vmem>>, vector<1x1x4x9x196xf32>
    %22 = vector.shape_cast %21 : vector<1x1x4x9x196xf32> to vector<4x9x196xf32>
    %23 = vector.shape_cast %20 : vector<4x9x196xf32> to vector<1x1x4x9x196xf32>
    tpu.vector_store %arg6[%c0_16, %c0_17, %c0_18, %c0_19, %c0_20], %23 {strides = array<i32>} : memref<1x1x4x9x196xf32, #tpu.memory_space<vmem>>, vector<1x1x4x9x196xf32>,
    return
  }
  func.func @transform_0(%arg0: i32, %arg1: i32) -> (i32, i32, i32, i32) {
    %c0_i32 = arith.constant 0 : i32
    %c0_i32_0 = arith.constant 0 : i32
    %c0_i32_1 = arith.constant 0 : i32
    %c0_i32_2 = arith.constant 0 : i32
    return %arg0, %c0_i32, %c0_i32_0, %c0_i32_1 : i32, i32, i32, i32
  }
  func.func @transform_1(%arg0: i32, %arg1: i32) -> (i32, i32, i32, i32) {
    %c0_i32 = arith.constant 0 : i32
    %c0_i32_0 = arith.constant 0 : i32
    %c0_i32_1 = arith.constant 0 : i32
    %c0_i32_2 = arith.constant 0 : i32
    return %arg1, %c0_i32, %c0_i32_0, %c0_i32_1 : i32, i32, i32, i32
  }
  func.func @transform_2(%arg0: i32, %arg1: i32) -> (i32, i32, i32, i32) {
    %c0_i32 = arith.constant 0 : i32
    %c0_i32_0 = arith.constant 0 : i32
    %c0_i32_1 = arith.constant 0 : i32
    %c0_i32_2 = arith.constant 0 : i32
    return %arg1, %c0_i32, %c0_i32_0, %c0_i32_1 : i32, i32, i32, i32
  }
  func.func @transform_3(%arg0: i32, %arg1: i32) -> (i32, i32, i32, i32) {
    %c0_i32 = arith.constant 0 : i32
    %c0_i32_0 = arith.constant 0 : i32
    %c0_i32_1 = arith.constant 0 : i32
    %c0_i32_2 = arith.constant 0 : i32
    return %arg1, %c0_i32, %c0_i32_0, %c0_i32_1 : i32, i32, i32, i32
  }
  func.func @transform_4(%arg0: i32, %arg1: i32) -> (i32, i32, i32, i32, i32) {
    %c0_i32 = arith.constant 0 : i32
    %c0_i32_0 = arith.constant 0 : i32
    %c0_i32_1 = arith.constant 0 : i32
    %c0_i32_2 = arith.constant 0 : i32
    return %arg0, %arg1, %c0_i32, %c0_i32_0, %c0_i32_1 : i32, i32, i32, i32, i32
  }
}

</mosaic_0001>

<llo_original>
// kernel: tvar_forward.1
$region0: #{tvar_forward.1}
  #allocation0 [shape = 'u32[]', space=smem, size = 0x4, offset = 0x4, fixed_abs, tag = 'smem constant byte address 0x4 - core index']
  #allocation1 [shape = 'u32[144,128]{1,0:T(1,128)}', space=vmem, size = 0x12000, scoped, tag = 'internal scratch']
  %s0 = inlined_call_operand.vmem [shape: f32[2,4,9,196], index: 0, kind: input, shape index: {}]
  %s1 = inlined_call_operand.vmem [shape: f32[3,4,9,1], index: 1, kind: input, shape index: {}]
  %s2 = inlined_call_operand.vmem [shape: f32[3,4,1,1], index: 2, kind: input, shape index: {}]
  %s3 = inlined_call_operand.vmem [shape: f32[3,4,1,1], index: 3, kind: input, shape index: {}]
  %s4 = inlined_call_operand.vmem [shape: f32[2,3,4,9,196], index: 4, kind: output, shape index: {}]
  %s5 = sld [smem:[#allocation0]]
  $region49: #{tvar_forward.1} parent=0
    _
  %s7 = ssub.s32 1, %s5
  %s8 = scalar_select 0, %s7, %s5
  loop: start=0, step=1, limit=8
  $region2: #{tvar_forward.1} parent=0 // loop_pre_header
    _
  $region3: #{tvar_forward.1} parent=0 // loop_header
    %s10 = sphi 0, %s14
    %p11 = scmp.ge.s32.totalorder %s10, 8
    %s17 = sphi 0, %s29
    %s18 = sphi 0, %s25
    %s19 = sphi 0, %s17
    %s20 = sphi 0, %s18
    %s21 = sphi 0, %s19
    %s22 = sphi 0, %s20
    %s32 = sphi 0, %s34
    %s35 = sphi 0, %s32
    %s36 = sphi 0, %s35
    %s52 = sphi 0, %s36
    %s58 = sphi 0, %s60
    %s61 = sphi 0, %s58
    %s62 = sphi 0, %s61
    %s78 = sphi 0, %s62
    %s84 = sphi 0, %s86
    %s87 = sphi 0, %s84
    %s88 = sphi 0, %s87
    %s104 = sphi 0, %s88
    %s110 = sphi 0, %s112
    %s113 = sphi 0, %s110
    %s114 = sphi 0, %s113
    %s130 = sphi 0, %s114
    %s138 = sphi 0, %s140
    %s141 = sphi 0, %s138
    %s142 = sphi 0, %s141
    %s158 = sphi 0, %s142
  $region4: #{tvar_forward.1} parent=0 // loop_header_branch
    %13 = sbr.rel (%p11) target = $region8
  $region5: #{tvar_forward.1} parent=0 // loop_body
    %s15 = ssub.s32 %s10, 1
    %s16 = ssub.s32 %s10, 2
    %s23 = sadd.s32 1, %s18
    %p24 = scmp.ge.s32.totalorder %s23, 3
    %s25 = scalar_select %p24, 0, %s23
    %s26 = sadd.s32 1, %s17
    %s27 = scalar_select %p24, %s26, %s17
    %p28 = scmp.ge.s32.totalorder %s27, 2
    %s29 = scalar_select %p28, 0, %s27
    %s30 = ssub.s32 %s17, %s29
    %p31 = scmp.eq.s32.totalorder %s30, 0
    %s33 = sadd.s32 %s32, 1
    %s34 = scalar_select %p31, %s32, %s33
    %p37 = pneg %p31
    %p38 = scmp.eq.s32.totalorder %s10, 5
    %p39 = por %p37, %p38
    %p40 = scmp.ne.s32.totalorder %s32, %s35
    %p41 = scmp.eq.s32.totalorder %s10, 0
    %p42 = por %p40, %p41
    %p43 = scmp.ne.s32.totalorder %s32, %s35
    %p44 = scmp.eq.s32.totalorder %s15, 5
    %p45 = por %p43, %p44
    %p46 = scmp.ne.s32.totalorder %s35, %s36
    %p47 = scmp.eq.s32.totalorder %s15, 0
    %p48 = por %p46, %p47
    %p49 = scmp.ne.s32.totalorder %s35, %s36
    %p50 = scmp.eq.s32.totalorder %s16, 5
    %p51 = por %p49, %p50
    %p53 = scmp.ne.s32.totalorder %s36, %s52
    %p54 = scmp.eq.s32.totalorder %s16, 0
    %p55 = por %p53, %p54
    %s56 = ssub.s32 %s18, %s25
    %p57 = scmp.eq.s32.totalorder %s56, 0
    %s59 = sadd.s32 %s58, 1
    %s60 = scalar_select %p57, %s58, %s59
    %p63 = pneg %p57
    %p64 = scmp.eq.s32.totalorder %s10, 5
    %p65 = por %p63, %p64
    %p66 = scmp.ne.s32.totalorder %s58, %s61
    %p67 = scmp.eq.s32.totalorder %s10, 0
    %p68 = por %p66, %p67
    %p69 = scmp.ne.s32.totalorder %s58, %s61
    %p70 = scmp.eq.s32.totalorder %s15, 5
    %p71 = por %p69, %p70
    %p72 = scmp.ne.s32.totalorder %s61, %s62
    %p73 = scmp.eq.s32.totalorder %s15, 0
    %p74 = por %p72, %p73
    %p75 = scmp.ne.s32.totalorder %s61, %s62
    %p76 = scmp.eq.s32.totalorder %s16, 5
    %p77 = por %p75, %p76
    %p79 = scmp.ne.s32.totalorder %s62, %s78
    %p80 = scmp.eq.s32.totalorder %s16, 0
    %p81 = por %p79, %p80
    %s82 = ssub.s32 %s18, %s25
    %p83 = scmp.eq.s32.totalorder %s82, 0
    %s85 = sadd.s32 %s84, 1
    %s86 = scalar_select %p83, %s84, %s85
    %p89 = pneg %p83
    %p90 = scmp.eq.s32.totalorder %s10, 5
    %p91 = por %p89, %p90
    %p92 = scmp.ne.s32.totalorder %s84, %s87
    %p93 = scmp.eq.s32.totalorder %s10, 0
    %p94 = por %p92, %p93
    %p95 = scmp.ne.s32.totalorder %s84, %s87
    %p96 = scmp.eq.s32.totalorder %s15, 5
    %p97 = por %p95, %p96
    %p98 = scmp.ne.s32.totalorder %s87, %s88
    %p99 = scmp.eq.s32.totalorder %s15, 0
    %p100 = por %p98, %p99
    %p101 = scmp.ne.s32.totalorder %s87, %s88
    %p102 = scmp.eq.s32.totalorder %s16, 5
    %p103 = por %p101, %p102
    %p105 = scmp.ne.s32.totalorder %s88, %s104
    %p106 = scmp.eq.s32.totalorder %s16, 0
    %p107 = por %p105, %p106
    %s108 = ssub.s32 %s18, %s25
    %p109 = scmp.eq.s32.totalorder %s108, 0
    %s111 = sadd.s32 %s110, 1
    %s112 = scalar_select %p109, %s110, %s111
    %p115 = pneg %p109
    %p116 = scmp.eq.s32.totalorder %s10, 5
    %p117 = por %p115, %p116
    %p118 = scmp.ne.s32.totalorder %s110, %s113
    %p119 = scmp.eq.s32.totalorder %s10, 0
    %p120 = por %p118, %p119
    %p121 = scmp.ne.s32.totalorder %s110, %s113
    %p122 = scmp.eq.s32.totalorder %s15, 5
    %p123 = por %p121, %p122
    %p124 = scmp.ne.s32.totalorder %s113, %s114
    %p125 = scmp.eq.s32.totalorder %s15, 0
    %p126 = por %p124, %p125
    %p127 = scmp.ne.s32.totalorder %s113, %s114
    %p128 = scmp.eq.s32.totalorder %s16, 5
    %p129 = por %p127, %p128
    %p131 = scmp.ne.s32.totalorder %s114, %s130
    %p132 = scmp.eq.s32.totalorder %s16, 0
    %p133 = por %p131, %p132
    %s134 = ssub.s32 %s17, %s29
    %s135 = ssub.s32 %s18, %s25
    %s136 = sor.u32 %s134, %s135
    %p137 = scmp.eq.s32.totalorder %s136, 0
    %s139 = sadd.s32 %s138, 1
    %s140 = scalar_select %p137, %s138, %s139
    %p143 = pneg %p137
    %p144 = scmp.eq.s32.totalorder %s10, 5
    %p145 = por %p143, %p144
    %p146 = scmp.ne.s32.totalorder %s138, %s141
    %p147 = scmp.eq.s32.totalorder %s10, 0
    %p148 = por %p146, %p147
    %p149 = scmp.ne.s32.totalorder %s138, %s141
    %p150 = scmp.eq.s32.totalorder %s15, 5
    %p151 = por %p149, %p150
    %p152 = scmp.ne.s32.totalorder %s141, %s142
    %p153 = scmp.eq.s32.totalorder %s15, 0
    %p154 = por %p152, %p153
    %p155 = scmp.ne.s32.totalorder %s141, %s142
    %p156 = scmp.eq.s32.totalorder %s16, 5
    %p157 = por %p155, %p156
    %p159 = scmp.ne.s32.totalorder %s142, %s158
    %p160 = scmp.eq.s32.totalorder %s16, 0
    %p161 = por %p159, %p160
    %p162 = scmp.le.s32.totalorder 1, %s10
    %p163 = scmp.lt.s32.totalorder %s10, 7
    %p164 = pnand %p162, %p163
    %p165 = pneg %p164
    // Predicated region
    $region9: #{tvar_forward.1} parent=5 // pred_check
      _
    $region10: #{tvar_forward.1} parent=5 // pred_check_branch
      %167 = sbr.rel (%p164) target = $region12
    $region11: #{tvar_forward.1} parent=5 // pred_region
      %s168 = ssub.s32 %s10, 1
    $region12: #{tvar_forward.1} parent=5 // pred_fallthru
      _
    %p169 = scmp.lt.s32.totalorder %s10, 6
    // Predicated region
    $region13: #{tvar_forward.1} parent=5 // pred_check
      %p170 = pneg %p169
    $region14: #{tvar_forward.1} parent=5 // pred_check_branch
      %172 = sbr.rel (%p170) target = $region16
    $region15: #{tvar_forward.1} parent=5 // pred_region
      // Predicated region
      $region17: #{tvar_forward.1} parent=15 // pred_check
        %p173 = pneg %p42
      $region18: #{tvar_forward.1} parent=15 // pred_check_branch
        %175 = sbr.rel (%p173) target = $region20
      $region19: #{tvar_forward.1} parent=15 // pred_region
        %p176 = scmp.lt.s32.totalorder %s17, 1
        %s177 = scalar_select %p176, %s17, 1
        %s178 = smul.addr %s177, 16
        %s179 = smul.addr %s178, 8
        %s180 = scalar_lea.vmem %s0, %s179
      $region20: #{tvar_forward.1} parent=15 // pred_fallthru
        _
      // Predicated region
      $region21: #{tvar_forward.1} parent=15 // pred_check
        %p181 = pneg %p68
      $region22: #{tvar_forward.1} parent=15 // pred_check_branch
        %183 = sbr.rel (%p181) target = $region24
      $region23: #{tvar_forward.1} parent=15 // pred_region
        %p184 = scmp.lt.s32.totalorder %s18, 2
        %s185 = scalar_select %p184, %s18, 2
        %s186 = smul.addr %s185, 8
        %s187 = smul.addr %s186, 8
        %s188 = scalar_lea.vmem %s1, %s187
      $region24: #{tvar_forward.1} parent=15 // pred_fallthru
        _
      // Predicated region
      $region25: #{tvar_forward.1} parent=15 // pred_check
        %p189 = pneg %p94
      $region26: #{tvar_forward.1} parent=15 // pred_check_branch
        %191 = sbr.rel (%p189) target = $region28
      $region27: #{tvar_forward.1} parent=15 // pred_region
        %p192 = scmp.lt.s32.totalorder %s18, 2
        %s193 = scalar_select %p192, %s18, 2
        %s194 = smul.addr %s193, 4
        %s195 = scalar_lea.vmem %s2, %s194
      $region28: #{tvar_forward.1} parent=15 // pred_fallthru
        _
      // Predicated region
      $region29: #{tvar_forward.1} parent=15 // pred_check
        %p196 = pneg %p120
      $region30: #{tvar_forward.1} parent=15 // pred_check_branch
        %198 = sbr.rel (%p196) target = $region32
      $region31: #{tvar_forward.1} parent=15 // pred_region
        %p199 = scmp.lt.s32.totalorder %s18, 2
        %s200 = scalar_select %p199, %s18, 2
        %s201 = smul.addr %s200, 4
        %s202 = scalar_lea.vmem %s3, %s201
      $region32: #{tvar_forward.1} parent=15 // pred_fallthru
        _
    $region16: #{tvar_forward.1} parent=5 // pred_fallthru
      _
    %p203 = scmp.le.s32.totalorder 1, %s10
    %p204 = scmp.lt.s32.totalorder %s10, 7
    %p205 = pnand %p203, %p204
    %p206 = pneg %p205
    // Predicated region
    $region33: #{tvar_forward.1} parent=5 // pred_check
      _
    $region34: #{tvar_forward.1} parent=5 // pred_check_branch
      %208 = sbr.rel (%p205) target = $region36
    $region35: #{tvar_forward.1} parent=5 // pred_region
      %s209 = ssub.s32 %s10, 1
      %p210 = scmp.lt.s32.totalorder %s19, 1
      %s211 = scalar_select %p210, %s19, 1
      %s212 = smul.addr %s211, 16
      %s213 = smul.addr %s212, 8
      %s214 = scalar_lea.vmem %s0, %s213
      %p215 = pneg %p48
      %p216 = pneg %p45
      %p217 = scmp.lt.s32.totalorder %s20, 2
      %s218 = scalar_select %p217, %s20, 2
      %s219 = smul.addr %s218, 8
      %s220 = smul.addr %s219, 8
      %s221 = scalar_lea.vmem %s1, %s220
      %p222 = pneg %p74
      %p223 = pneg %p71
      %p224 = scmp.lt.s32.totalorder %s20, 2
      %s225 = scalar_select %p224, %s20, 2
      %s226 = smul.addr %s225, 4
      %s227 = scalar_lea.vmem %s2, %s226
      %p228 = pneg %p100
      %p229 = pneg %p97
      %p230 = scmp.lt.s32.totalorder %s20, 2
      %s231 = scalar_select %p230, %s20, 2
      %s232 = smul.addr %s231, 4
      %s233 = scalar_lea.vmem %s3, %s232
      %p234 = pneg %p126
      %p235 = pneg %p123
      %p236 = pneg %p154
      %p237 = pneg %p151
      %p238 = scmp.lt.s32.totalorder %s19, 1
      %s239 = scalar_select %p238, %s19, 1
      %p240 = scmp.lt.s32.totalorder %s20, 2
      %s241 = scalar_select %p240, %s20, 2
      %s242 = smul.addr %s241, 16
      %s243 = smul.addr %s239, 48
      %s244 = sadd.s32 %s242, %s243
      %s245 = smul.addr %s244, 8
      %s246 = scalar_lea.vmem %s4, %s245
      %p247 = scmp.lt.s32.totalorder %s19, 1
      %s248 = scalar_select %p247, %s19, 1
      %s249 = smul.addr %s248, 16
      %s250 = smul.addr %s249, 8
      %s251 = scalar_lea.vmem %s0, %s250
      %p252 = scmp.lt.s32.totalorder %s20, 2
      %s253 = scalar_select %p252, %s20, 2
      %s254 = smul.addr %s253, 8
      %s255 = smul.addr %s254, 8
      %s256 = scalar_lea.vmem %s1, %s255
      %p257 = scmp.lt.s32.totalorder %s20, 2
      %s258 = scalar_select %p257, %s20, 2
      %s259 = smul.addr %s258, 4
      %s260 = scalar_lea.vmem %s2, %s259
      %p261 = scmp.lt.s32.totalorder %s20, 2
      %s262 = scalar_select %p261, %s20, 2
      %s263 = smul.addr %s262, 4
      %s264 = scalar_lea.vmem %s3, %s263
      %p265 = scmp.lt.s32.totalorder %s19, 1
      %s266 = scalar_select %p265, %s19, 1
      %p267 = scmp.lt.s32.totalorder %s20, 2
      %s268 = scalar_select %p267, %s20, 2
      %s269 = smul.addr %s268, 16
      %s270 = smul.addr %s266, 48
      %s271 = sadd.s32 %s269, %s270
      %s272 = smul.addr %s271, 8
      %s273 = scalar_lea.vmem %s4, %s272
      %v274 = vld [vmem:[%s251] sm:$0xff]
      %v275 = vld [vmem:[%s251 + $0x8] sm:$0xff]
      %v276 = vld [vmem:[%s251 + $0x10] sm:$0x1]
      %v277 = vld [vmem:[%s251 + $0x18] sm:$0x1]
      %v278 = vld [vmem:[%s251 + $0x20] sm:$0xff]
      %v279 = vld [vmem:[%s251 + $0x28] sm:$0xff]
      %v280 = vld [vmem:[%s251 + $0x30] sm:$0x1]
      %v281 = vld [vmem:[%s251 + $0x38] sm:$0x1]
      %v282 = vld [vmem:[%s251 + $0x40] sm:$0xff]
      %v283 = vld [vmem:[%s251 + $0x48] sm:$0xff]
      %v284 = vld [vmem:[%s251 + $0x50] sm:$0x1]
      %v285 = vld [vmem:[%s251 + $0x58] sm:$0x1]
      %v286 = vld [vmem:[%s251 + $0x60] sm:$0xff]
      %v287 = vld [vmem:[%s251 + $0x68] sm:$0xff]
      %v288 = vld [vmem:[%s251 + $0x70] sm:$0x1]
      %v289 = vld [vmem:[%s251 + $0x78] sm:$0x1]
      %v290 = vld [vmem:[%s256] sm:$0xff]
      %v291 = vld [vmem:[%s256 + $0x8] sm:$0x1]
      %v292 = vld [vmem:[%s256 + $0x10] sm:$0xff]
      %v293 = vld [vmem:[%s256 + $0x18] sm:$0x1]
      %v294 = vld [vmem:[%s256 + $0x20] sm:$0xff]
      %v295 = vld [vmem:[%s256 + $0x28] sm:$0x1]
      %v296 = vld [vmem:[%s256 + $0x30] sm:$0xff]
      %v297 = vld [vmem:[%s256 + $0x38] sm:$0x1]
      %v298 = vld [vmem:[%s260] sm:$0x1]
      %v299 = vld [vmem:[%s260 + $0x1] sm:$0x1]
      %v300 = vld [vmem:[%s260 + $0x2] sm:$0x1]
      %v301 = vld [vmem:[%s260 + $0x3] sm:$0x1]
      %v302 = vld [vmem:[%s264] sm:$0x1]
      %v303 = vld [vmem:[%s264 + $0x1] sm:$0x1]
      %v304 = vld [vmem:[%s264 + $0x2] sm:$0x1]
      %v305 = vld [vmem:[%s264 + $0x3] sm:$0x1]
      %307 = vset.pattern.permute.xlu0 0
      %308 = vperm.xlu0 %307, %v290
      %v309 = vpop.permute.xlu0 %308
      %312 = vset.pattern.permute.xlu0 0
      %313 = vperm.xlu0 %312, %v291
      %v314 = vpop.permute.xlu0 %313
      %317 = vset.pattern.permute.xlu0 0
      %318 = vperm.xlu0 %317, %v292
      %v319 = vpop.permute.xlu0 %318
      %322 = vset.pattern.permute.xlu0 0
      %323 = vperm.xlu0 %322, %v293
      %v324 = vpop.permute.xlu0 %323
      %327 = vset.pattern.permute.xlu0 0
      %328 = vperm.xlu0 %327, %v294
      %v329 = vpop.permute.xlu0 %328
      %332 = vset.pattern.permute.xlu0 0
      %333 = vperm.xlu0 %332, %v295
      %v334 = vpop.permute.xlu0 %333
      %337 = vset.pattern.permute.xlu0 0
      %338 = vperm.xlu0 %337, %v296
      %v339 = vpop.permute.xlu0 %338
      %342 = vset.pattern.permute.xlu0 0
      %343 = vperm.xlu0 %342, %v297
      %v344 = vpop.permute.xlu0 %343
      %v346 = vmul.f32 %v274, %v309
      %v347 = vmul.f32 %v275, %v309
      %v348 = vmul.f32 %v276, %v314
      %v349 = vmul.f32 %v277, %v314
      %v350 = vmul.f32 %v278, %v319
      %v351 = vmul.f32 %v279, %v319
      %v352 = vmul.f32 %v280, %v324
      %v353 = vmul.f32 %v281, %v324
      %v354 = vmul.f32 %v282, %v329
      %v355 = vmul.f32 %v283, %v329
      %v356 = vmul.f32 %v284, %v334
      %v357 = vmul.f32 %v285, %v334
      %v358 = vmul.f32 %v286, %v339
      %v359 = vmul.f32 %v287, %v339
      %v360 = vmul.f32 %v288, %v344
      %v361 = vmul.f32 %v289, %v344
      %vm362 = vcmask 1040384
      %v363 = vsel %vm362, %v348, 0.0
      %v364 = vadd.f32 %v346, %v363
      %v365 = vrot.slane %v364, 4
      %v366 = vadd.f32 %v364, %v365
      %v367 = vrot.slane %v366, 2
      %v368 = vadd.f32 %v366, %v367
      %v369 = vrot.slane %v368, 1
      %v370 = vadd.f32 %v368, %v369
      %vm371 = vcmask 556032
      %v372 = vsel %vm371, %v347, 0.0
      %vm373 = vcmask 548864
      %v374 = vsel %vm373, %v349, 0.0
      %v375 = vadd.f32 %v372, %v374
      %v376 = vrot.slane %v375, 4
      %v377 = vadd.f32 %v375, %v376
      %v378 = vrot.slane %v377, 2
      %v379 = vadd.f32 %v377, %v378
      %v380 = vrot.slane %v379, 1
      %v381 = vadd.f32 %v379, %v380
      %v382 = vsel %vm362, %v352, 0.0
      %v383 = vadd.f32 %v350, %v382
      %v384 = vrot.slane %v383, 4
      %v385 = vadd.f32 %v383, %v384
      %v386 = vrot.slane %v385, 2
      %v387 = vadd.f32 %v385, %v386
      %v388 = vrot.slane %v387, 1
      %v389 = vadd.f32 %v387, %v388
      %v390 = vsel %vm371, %v351, 0.0
      %v391 = vsel %vm373, %v353, 0.0
      %v392 = vadd.f32 %v390, %v391
      %v393 = vrot.slane %v392, 4
      %v394 = vadd.f32 %v392, %v393
      %v395 = vrot.slane %v394, 2
      %v396 = vadd.f32 %v394, %v395
      %v397 = vrot.slane %v396, 1
      %v398 = vadd.f32 %v396, %v397
      %v399 = vsel %vm362, %v356, 0.0
      %v400 = vadd.f32 %v354, %v399
      %v401 = vrot.slane %v400, 4
      %v402 = vadd.f32 %v400, %v401
      %v403 = vrot.slane %v402, 2
      %v404 = vadd.f32 %v402, %v403
      %v405 = vrot.slane %v404, 1
      %v406 = vadd.f32 %v404, %v405
      %v407 = vsel %vm371, %v355, 0.0
      %v408 = vsel %vm373, %v357, 0.0
      %v409 = vadd.f32 %v407, %v408
      %v410 = vrot.slane %v409, 4
      %v411 = vadd.f32 %v409, %v410
      %v412 = vrot.slane %v411, 2
      %v413 = vadd.f32 %v411, %v412
      %v414 = vrot.slane %v413, 1
      %v415 = vadd.f32 %v413, %v414
      %v416 = vsel %vm362, %v360, 0.0
      %v417 = vadd.f32 %v358, %v416
      %v418 = vrot.slane %v417, 4
      %v419 = vadd.f32 %v417, %v418
      %v420 = vrot.slane %v419, 2
      %v421 = vadd.f32 %v419, %v420
      %v422 = vrot.slane %v421, 1
      %v423 = vadd.f32 %v421, %v422
      %v424 = vsel %vm371, %v359, 0.0
      %v425 = vsel %vm373, %v361, 0.0
      %v426 = vadd.f32 %v424, %v425
      %v427 = vrot.slane %v426, 4
      %v428 = vadd.f32 %v426, %v427
      %v429 = vrot.slane %v428, 2
      %v430 = vadd.f32 %v428, %v429
      %v431 = vrot.slane %v430, 1
      %v432 = vadd.f32 %v430, %v431
      %v433 = vmul.f32 %v370, 0.11111111
      %v434 = vmul.f32 %v381, 0.11111111
      %v435 = vmul.f32 %v389, 0.11111111
      %v436 = vmul.f32 %v398, 0.11111111
      %v437 = vmul.f32 %v406, 0.11111111
      %v438 = vmul.f32 %v415, 0.11111111
      %v439 = vmul.f32 %v423, 0.11111111
      %v440 = vmul.f32 %v432, 0.11111111
      %v441 = vsub.f32 %v346, %v433
      %v442 = vsub.f32 %v347, %v434
      %v443 = vsub.f32 %v348, %v433
      %v444 = vsub.f32 %v349, %v434
      %v445 = vsub.f32 %v350, %v435
      %v446 = vsub.f32 %v351, %v436
      %v447 = vsub.f32 %v352, %v435
      %v448 = vsub.f32 %v353, %v436
      %v449 = vsub.f32 %v354, %v437
      %v450 = vsub.f32 %v355, %v438
      %v451 = vsub.f32 %v356, %v437
      %v452 = vsub.f32 %v357, %v438
      %v453 = vsub.f32 %v358, %v439
      %v454 = vsub.f32 %v359, %v440
      %v455 = vsub.f32 %v360, %v439
      %v456 = vsub.f32 %v361, %v440
      %v457 = vmul.f32 %v441, %v441
      %v458 = vmul.f32 %v442, %v442
      %v459 = vmul.f32 %v443, %v443
      %v460 = vmul.f32 %v444, %v444
      %v461 = vmul.f32 %v445, %v445
      %v462 = vmul.f32 %v446, %v446
      %v463 = vmul.f32 %v447, %v447
      %v464 = vmul.f32 %v448, %v448
      %v465 = vmul.f32 %v449, %v449
      %v466 = vmul.f32 %v450, %v450
      %v467 = vmul.f32 %v451, %v451
      %v468 = vmul.f32 %v452, %v452
      %v469 = vmul.f32 %v453, %v453
      %v470 = vmul.f32 %v454, %v454
      %v471 = vmul.f32 %v455, %v455
      %v472 = vmul.f32 %v456, %v456
      %v477 = vlaneseq
      %v478 = vshrl.u32 %v477, 7
      %v479 = vsub.s32 0, %v478
      %v480 = vrot.slane %v298, %v479
      %v481 = vlaneseq
      %v482 = vshrl.u32 %v481, 7
      %v483 = vsub.s32 0, %v482
      %v484 = vrot.slane %v299, %v483
      %v485 = vlaneseq
      %v486 = vshrl.u32 %v485, 7
      %v487 = vsub.s32 0, %v486
      %v488 = vrot.slane %v300, %v487
      %v489 = vlaneseq
      %v490 = vshrl.u32 %v489, 7
      %v491 = vsub.s32 0, %v490
      %v492 = vrot.slane %v301, %v491
      %493 = vset.pattern.permute.xlu0 0
      %494 = vperm.xlu0 %493, %v480
      %v495 = vpop.permute.xlu0 %494
      %497 = vset.pattern.permute.xlu0 0
      %498 = vperm.xlu0 %497, %v484
      %v499 = vpop.permute.xlu0 %498
      %501 = vset.pattern.permute.xlu0 0
      %502 = vperm.xlu0 %501, %v488
      %v503 = vpop.permute.xlu0 %502
      %505 = vset.pattern.permute.xlu0 0
      %506 = vperm.xlu0 %505, %v492
      %v507 = vpop.permute.xlu0 %506
      %v509 = vmul.f32 %v457, %v495
      %v510 = vmul.f32 %v458, %v495
      %v511 = vmul.f32 %v459, %v495
      %v512 = vmul.f32 %v460, %v495
      %v513 = vmul.f32 %v461, %v499
      %v514 = vmul.f32 %v462, %v499
      %v515 = vmul.f32 %v463, %v499
      %v516 = vmul.f32 %v464, %v499
      %v517 = vmul.f32 %v465, %v503
      %v518 = vmul.f32 %v466, %v503
      %v519 = vmul.f32 %v467, %v503
      %v520 = vmul.f32 %v468, %v503
      %v521 = vmul.f32 %v469, %v507
      %v522 = vmul.f32 %v470, %v507
      %v523 = vmul.f32 %v471, %v507
      %v524 = vmul.f32 %v472, %v507
      %v529 = vlaneseq
      %v530 = vshrl.u32 %v529, 7
      %v531 = vsub.s32 0, %v530
      %v532 = vrot.slane %v302, %v531
      %v533 = vlaneseq
      %v534 = vshrl.u32 %v533, 7
      %v535 = vsub.s32 0, %v534
      %v536 = vrot.slane %v303, %v535
      %v537 = vlaneseq
      %v538 = vshrl.u32 %v537, 7
      %v539 = vsub.s32 0, %v538
      %v540 = vrot.slane %v304, %v539
      %v541 = vlaneseq
      %v542 = vshrl.u32 %v541, 7
      %v543 = vsub.s32 0, %v542
      %v544 = vrot.slane %v305, %v543
      %545 = vset.pattern.permute.xlu0 0
      %546 = vperm.xlu0 %545, %v532
      %v547 = vpop.permute.xlu0 %546
      %549 = vset.pattern.permute.xlu0 0
      %550 = vperm.xlu0 %549, %v536
      %v551 = vpop.permute.xlu0 %550
      %553 = vset.pattern.permute.xlu0 0
      %554 = vperm.xlu0 %553, %v540
      %v555 = vpop.permute.xlu0 %554
      %557 = vset.pattern.permute.xlu0 0
      %558 = vperm.xlu0 %557, %v544
      %v559 = vpop.permute.xlu0 %558
      %v561 = vadd.f32 %v509, %v547
      %v562 = vadd.f32 %v510, %v547
      %v563 = vadd.f32 %v511, %v547
      %v564 = vadd.f32 %v512, %v547
      %v565 = vadd.f32 %v513, %v551
      %v566 = vadd.f32 %v514, %v551
      %v567 = vadd.f32 %v515, %v551
      %v568 = vadd.f32 %v516, %v551
      %v569 = vadd.f32 %v517, %v555
      %v570 = vadd.f32 %v518, %v555
      %v571 = vadd.f32 %v519, %v555
      %v572 = vadd.f32 %v520, %v555
      %v573 = vadd.f32 %v521, %v559
      %v574 = vadd.f32 %v522, %v559
      %v575 = vadd.f32 %v523, %v559
      %v576 = vadd.f32 %v524, %v559
      %577 = vst [vmem:[%s273] sm:$0xff] %v561
      %578 = vst.msk [vmem:[%s273 + $0x8] sm:$0xff] %vm371, %v562
      %579 = vst [vmem:[%s273 + $0x10] sm:$0x1] %v563
      %580 = vst.msk [vmem:[%s273 + $0x18] sm:$0x1] %vm373, %v564
      %581 = vst [vmem:[%s273 + $0x20] sm:$0xff] %v565
      %582 = vst.msk [vmem:[%s273 + $0x28] sm:$0xff] %vm371, %v566
      %583 = vst [vmem:[%s273 + $0x30] sm:$0x1] %v567
      %584 = vst.msk [vmem:[%s273 + $0x38] sm:$0x1] %vm373, %v568
      %585 = vst [vmem:[%s273 + $0x40] sm:$0xff] %v569
      %586 = vst.msk [vmem:[%s273 + $0x48] sm:$0xff] %vm371, %v570
      %587 = vst [vmem:[%s273 + $0x50] sm:$0x1] %v571
      %588 = vst.msk [vmem:[%s273 + $0x58] sm:$0x1] %vm373, %v572
      %589 = vst [vmem:[%s273 + $0x60] sm:$0xff] %v573
      %590 = vst.msk [vmem:[%s273 + $0x68] sm:$0xff] %vm371, %v574
      %591 = vst [vmem:[%s273 + $0x70] sm:$0x1] %v575
      %592 = vst.msk [vmem:[%s273 + $0x78] sm:$0x1] %vm373, %v576
      %p593 = scmp.lt.s32.totalorder %s19, 1
      %s594 = scalar_select %p593, %s19, 1
      %p595 = scmp.lt.s32.totalorder %s20, 2
      %s596 = scalar_select %p595, %s20, 2
      %s597 = smul.addr %s596, 16
      %s598 = smul.addr %s594, 48
      %s599 = sadd.s32 %s597, %s598
      %s600 = smul.addr %s599, 8
      %s601 = scalar_lea.vmem %s4, %s600
      // Predicated region
      $region37: #{tvar_forward.1} parent=35 // pred_check
        %p602 = pneg %p151
      $region38: #{tvar_forward.1} parent=35 // pred_check_branch
        %604 = sbr.rel (%p602) target = $region40
      $region39: #{tvar_forward.1} parent=35 // pred_region
        _
      $region40: #{tvar_forward.1} parent=35 // pred_fallthru
        _
    $region36: #{tvar_forward.1} parent=5 // pred_fallthru
      _
    %p605 = scmp.le.s32.totalorder 2, %s10
    // Predicated region
    $region41: #{tvar_forward.1} parent=5 // pred_check
      %p606 = pneg %p605
    $region42: #{tvar_forward.1} parent=5 // pred_check_branch
      %608 = sbr.rel (%p606) target = $region44
    $region43: #{tvar_forward.1} parent=5 // pred_region
      %s609 = ssub.s32 %s10, 2
      // Predicated region
      $region45: #{tvar_forward.1} parent=43 // pred_check
        %p610 = pneg %p157
      $region46: #{tvar_forward.1} parent=43 // pred_check_branch
        %612 = sbr.rel (%p610) target = $region48
      $region47: #{tvar_forward.1} parent=43 // pred_region
        %p613 = scmp.lt.s32.totalorder %s21, 1
        %s614 = scalar_select %p613, %s21, 1
        %p615 = scmp.lt.s32.totalorder %s22, 2
        %s616 = scalar_select %p615, %s22, 2
        %s617 = smul.addr %s616, 16
        %s618 = smul.addr %s614, 48
        %s619 = sadd.s32 %s617, %s618
        %s620 = smul.addr %s619, 8
        %s621 = scalar_lea.vmem %s4, %s620
      $region48: #{tvar_forward.1} parent=43 // pred_fallthru
        _
    $region44: #{tvar_forward.1} parent=5 // pred_fallthru
      _
  $region6: #{tvar_forward.1} parent=0 // loop_footer
    %s14 = sadd.s32 1, %s10
  $region7: #{tvar_forward.1} parent=0 // loop_footer_branch
    %9 = sbr.rel target = $region3
  $region8: #{tvar_forward.1} parent=0 // loop_exit
    _

</llo_original>
